<compile_context>
chip_gen: v7x
topology: tpu7x:2x2x1
jax: 0.10.0
libtpu: 0.0.40
codegen_flags: <defaults>
</compile_context>

<pallas_src>
import jax
import jax.numpy as jnp
from jax import lax
from jax.experimental import pallas as pl
from jax.experimental.pallas import tpu as pltpu


def _round_up(x, m):
    return (x + m - 1) // m * m


def _softmax_head_kernel(ids_ref, emb_ref, w_ref, b_ref, o_ref):
    """Fused embedding-lookup + nn.Linear classifier for one M-tile of tokens.

    ids_ref : [TM, 1] int32   token ids for this tile
    emb_ref : [V, K]  f32     embedding table (whole, VMEM-resident across grid steps)
    w_ref   : [K, N]  f32     classifier weight (transposed vs PyTorch, VMEM-resident)
    b_ref   : [1, N]  f32     classifier bias
    o_ref   : [TM, N] f32     output logits for this tile
    """
    tm = ids_ref.shape[0]
    vocab = emb_ref.shape[0]
    # Embedding gather fused as a one-hot matmul: numerically exact (each row multiplies
    # exactly one table row by 1.0), MXU-friendly, and avoids writing feats to HBM.
    onehot = (ids_ref[...] ==
              lax.broadcasted_iota(jnp.int32, (tm, vocab), 1)).astype(jnp.float32)
    feats = jnp.dot(onehot, emb_ref[...], preferred_element_type=jnp.float32)    # [TM, K]
    logits = jnp.dot(feats, w_ref[...], preferred_element_type=jnp.float32)      # [TM, N]
    # NOTE: the reference PyTorch forward returns raw logits (no softmax is applied there).
    o_ref[...] = (logits + b_ref[...]).astype(o_ref.dtype)


def softmax_head_forward(ids_flat, emb_table, w, b, *, tm_target=512):
    """ids_flat: [M] int32, emb_table: [V, K] f32, w: [K, N] f32, b: [1, N] f32 -> [M, N] f32."""
    (M,) = ids_flat.shape
    V, K = emb_table.shape
    Kw, N = w.shape
    assert K == Kw and b.shape == (1, N)

    # Tile only over M: K=32 / N=16 are tiny, so the contraction stays a single in-kernel
    # dot and the table / weight / bias stay VMEM-resident (constant index_map).  TM up to
    # 512 keeps the double-buffered working set far under every chip's scoped-VMEM default.
    TM = min(tm_target, _round_up(M, 8))
    M_pad = _round_up(M, TM)
    ids2d = jnp.pad(ids_flat.astype(jnp.int32), (0, M_pad - M)).reshape(M_pad, 1)

    out = pl.pallas_call(
        _softmax_head_kernel,
        out_shape=jax.ShapeDtypeStruct((M_pad, N), jnp.float32),
        grid=(pl.cdiv(M_pad, TM),),
        in_specs=[
            pl.BlockSpec((TM, 1), lambda i: (i, 0)),   # token ids, tiled over M
            pl.BlockSpec((V, K), lambda i: (0, 0)),    # embedding table, VMEM-resident
            pl.BlockSpec((K, N), lambda i: (0, 0)),    # classifier weight, VMEM-resident
            pl.BlockSpec((1, N), lambda i: (0, 0)),    # classifier bias, VMEM-resident
        ],
        out_specs=pl.BlockSpec((TM, N), lambda i: (i, 0)),
        compiler_params=pltpu.CompilerParams(
            # M tiles are independent -> shard grid steps across TensorCores (2x on v7x).
            dimension_semantics=("parallel",),
        ),
    )(ids2d, emb_table, w, b)
    return out[:M]


class SoftMaxPallas:
    """Pallas port of models/metrics.py::SoftMax (embedding -> nn.Linear classifier).

    The PyTorch `model` (embedding) submodule is an arbitrary user-supplied network; here
    it is instantiated as a deterministic token-embedding table, and the lookup is fused
    into the classifier kernel as a one-hot matmul so no feature matrix is materialized.
    """
    # TODO(synk): the original `model` embedding submodule is opaque; a simple embedding
    # table stands in for it (fused into the Pallas kernel as an exact one-hot matmul).

    def __init__(self, vocab_size, n_embed, n_keyword, key):
        k_emb, k_w, k_b = jax.random.split(key, 3)
        v_pad = _round_up(vocab_size, 8)   # sublane-align the table rows (padding never selected)
        emb = jax.random.normal(k_emb, (vocab_size, n_embed), dtype=jnp.float32) * 0.02
        self.emb_table = jnp.pad(emb, ((0, v_pad - vocab_size), (0, 0)))
        # nn.Linear default init: U(-1/sqrt(fan_in), 1/sqrt(fan_in)); stored as [in, out].
        bound = 1.0 / (n_embed ** 0.5)
        self.w = jax.random.uniform(k_w, (n_embed, n_keyword), jnp.float32, -bound, bound)
        self.b = jax.random.uniform(k_b, (1, n_keyword), jnp.float32, -bound, bound)
        self.vocab_size = vocab_size
        self.n_embed = n_embed
        self.n_keyword = n_keyword

    def __call__(self, x, y=None):
        # x: int32 token ids [batch, seq]; y is unused in the reference forward.
        batch, seq = x.shape
        ids_flat = x.reshape(-1)
        logits = softmax_head_forward(ids_flat, self.emb_table, self.w, self.b)
        return logits.reshape(batch, seq, self.n_keyword)


if __name__ == "__main__":
    key = jax.random.PRNGKey(0)
    k_model, k_x = jax.random.split(key)

    vocab_size, n_embed, n_keyword = 100, 32, 16
    batch, seq = 2, 8

    module = SoftMaxPallas(vocab_size, n_embed, n_keyword, k_model)

    x = jax.random.randint(k_x, (batch, seq), 0, vocab_size, dtype=jnp.int32)
    y = jnp.zeros((batch, seq), dtype=jnp.int32)  # unused, mirrors forward signature

    out = jax.block_until_ready(module(x, y))

    # reference check in plain JAX (gather + matmul + bias; forward returns raw logits)
    ref = (module.emb_table[x.reshape(-1)] @ module.w + module.b).reshape(batch, seq, n_keyword)
    assert out.shape == (batch, seq, n_keyword)
    assert jnp.allclose(out, ref, atol=1e-5, rtol=1e-5)

    # also exercise the multi-tile (grid > 1) pipelined path with a small M-tile
    out_tiled = jax.block_until_ready(
        softmax_head_forward(x.reshape(-1), module.emb_table, module.w, module.b, tm_target=8))
    assert jnp.allclose(out_tiled.reshape(batch, seq, n_keyword), ref, atol=1e-5, rtol=1e-5)

    print("KERNEL_OK")
</pallas_src>

<mosaic_0001>
module attributes {stable_mosaic.version = 11 : i64} {
  func.func @_softmax_head_kernel(%arg0: i32, %arg1: memref<16x1xi32, #tpu.memory_space<vmem>>, %arg2: memref<104x32xf32, #tpu.memory_space<vmem>>, %arg3: memref<32x16xf32, #tpu.memory_space<vmem>>, %arg4: memref<1x16xf32, #tpu.memory_space<vmem>>, %arg5: memref<16x16xf32, #tpu.memory_space<vmem>>) attributes {dimension_semantics = [#tpu.dimension_semantics<parallel>], iteration_bounds = array<i64: 1>, scalar_prefetch = 0 : i64, scratch_operands = 0 : i64, tpu.core_type = #tpu.core_type<tc>, window_params = [{transform_indices = @transform_0, window_bounds = array<i64: 16, 1>}, {pipeline_mode = #tpu.pipeline_mode<synchronous>, transform_indices = @transform_1, window_bounds = array<i64: 104, 32>}, {pipeline_mode = #tpu.pipeline_mode<synchronous>, transform_indices = @transform_2, window_bounds = array<i64: 32, 16>}, {pipeline_mode = #tpu.pipeline_mode<synchronous>, transform_indices = @transform_3, window_bounds = array<i64: 1, 16>}, {transform_indices = @transform_4, window_bounds = array<i64: 16, 16>}]} {
    %c0 = arith.constant 0 : index
    %c0_0 = arith.constant 0 : index
    %0 = vector.load %arg1[%c0, %c0_0] : memref<16x1xi32, #tpu.memory_space<vmem>>, vector<16x1xi32>
    %1 = tpu.iota {dimensions = array<i32: 1>} : vector<16x104xi32>
    %2 = vector.broadcast %0 : vector<16x1xi32> to vector<16x104xi32>
    %3 = arith.cmpi eq, %2, %1 : vector<16x104xi32>
    %4 = arith.extui %3 : vector<16x104xi1> to vector<16x104xi32>
    %5 = arith.sitofp %4 : vector<16x104xi32> to vector<16x104xf32>
    %c0_1 = arith.constant 0 : index
    %c0_2 = arith.constant 0 : index
    %6 = vector.load %arg2[%c0_1, %c0_2] : memref<104x32xf32, #tpu.memory_space<vmem>>, vector<104x32xf32>
    %cst = arith.constant dense<0.000000e+00> : vector<16x32xf32>
    %7 = tpu.matmul %5, %6, %cst {dimension_numbers = #tpu.dot_dimension_numbers<[1], [0], [0], [1], [0, 0, 1, 1], [], []>} : vector<16x104xf32>, vector<104x32xf32>, vector<16x32xf32> -> vector<16x32xf32>
    %c0_3 = arith.constant 0 : index
    %c0_4 = arith.constant 0 : index
    %8 = vector.load %arg3[%c0_3, %c0_4] : memref<32x16xf32, #tpu.memory_space<vmem>>, vector<32x16xf32>
    %cst_5 = arith.constant dense<0.000000e+00> : vector<16x16xf32>
    %9 = tpu.matmul %7, %8, %cst_5 {dimension_numbers = #tpu.dot_dimension_numbers<[1], [0], [0], [1], [0, 0, 1, 1], [], []>} : vector<16x32xf32>, vector<32x16xf32>, vector<16x16xf32> -> vector<16x16xf32>
    %c0_6 = arith.constant 0 : index
    %c0_7 = arith.constant 0 : index
    %10 = vector.load %arg4[%c0_6, %c0_7] : memref<1x16xf32, #tpu.memory_space<vmem>>, vector<1x16xf32>
    %11 = vector.broadcast %10 : vector<1x16xf32> to vector<16x16xf32>
    %12 = arith.addf %9, %11 : vector<16x16xf32>
    %c0_8 = arith.constant 0 : index
    %c0_9 = arith.constant 0 : index
    %13 = vector.load %arg5[%c0_8, %c0_9] : memref<16x16xf32, #tpu.memory_space<vmem>>, vector<16x16xf32>
    tpu.vector_store %arg5[%c0_8, %c0_9], %12 {strides = array<i32>} : memref<16x16xf32, #tpu.memory_space<vmem>>, vector<16x16xf32>,
    return
  }
  func.func @transform_0(%arg0: i32) -> (i32, i32) {
    %c0_i32 = arith.constant 0 : i32
    %c0_i32_0 = arith.constant 0 : i32
    return %arg0, %c0_i32 : i32, i32
  }
  func.func @transform_1(%arg0: i32) -> (i32, i32) {
    %c0_i32 = arith.constant 0 : i32
    %c0_i32_0 = arith.constant 0 : i32
    %c0_i32_1 = arith.constant 0 : i32
    return %c0_i32, %c0_i32_0 : i32, i32
  }
  func.func @transform_2(%arg0: i32) -> (i32, i32) {
    %c0_i32 = arith.constant 0 : i32
    %c0_i32_0 = arith.constant 0 : i32
    %c0_i32_1 = arith.constant 0 : i32
    return %c0_i32, %c0_i32_0 : i32, i32
  }
  func.func @transform_3(%arg0: i32) -> (i32, i32) {
    %c0_i32 = arith.constant 0 : i32
    %c0_i32_0 = arith.constant 0 : i32
    %c0_i32_1 = arith.constant 0 : i32
    return %c0_i32, %c0_i32_0 : i32, i32
  }
  func.func @transform_4(%arg0: i32) -> (i32, i32) {
    %c0_i32 = arith.constant 0 : i32
    %c0_i32_0 = arith.constant 0 : i32
    return %arg0, %c0_i32 : i32, i32
  }
}

</mosaic_0001>

<llo_original>
// kernel: tpu_custom_call.1
$region0: #{tpu_custom_call.1}
  #allocation0 [shape = 'u32[]', space=smem, size = 0x4, offset = 0x4, fixed_abs, tag = 'smem constant byte address 0x4 - core index']
  #allocation1 [shape = 'u32[144,128]{1,0:T(1,128)}', space=vmem, size = 0x12000, scoped, tag = 'internal scratch']
  %s0 = inlined_call_operand.vmem [shape: s32[16,1], index: 0, kind: input, shape index: {}]
  %s1 = inlined_call_operand.vmem [shape: f32[104,32], index: 1, kind: input, shape index: {}]
  %s2 = inlined_call_operand.vmem [shape: f32[32,16], index: 2, kind: input, shape index: {}]
  %s3 = inlined_call_operand.vmem [shape: f32[1,16], index: 3, kind: input, shape index: {}]
  %s4 = inlined_call_operand.hbm [shape: f32[16,16], index: 4, kind: output, shape index: {}]
  %s5 = sld [smem:[#allocation0]]
  $region26: #{tpu_custom_call.1} parent=0
    _
  %s7 = ssub.s32 1, %s5
  %s8 = scalar_select 0, %s7, %s5
  $region1: #{tpu_custom_call.1} parent=0
    #allocation2 [shape = 'u8[8192]{0}', space=vmem, size = 0x2000, scoped, tag = 'output window, operand 0, single buffered']
    #allocation3 [shape = 's32[1]{0}', space=sflag, size = 0x4, scoped, tag = 'scoped memory for tpu_custom_call.1']
    %9 = vsyncpa [#allocation3], 0
    // Predicated region
    $region2: #{tpu_custom_call.1} parent=1 // pred_check
      _
    $region3: #{tpu_custom_call.1} parent=1 // pred_check_branch
      %11 = sbr.rel (0) target = $region5
    $region4: #{tpu_custom_call.1} parent=1 // pred_region
      _
    $region5: #{tpu_custom_call.1} parent=1 // pred_fallthru
      _
    // Predicated region
    $region6: #{tpu_custom_call.1} parent=1 // pred_check
      _
    $region7: #{tpu_custom_call.1} parent=1 // pred_check_branch
      %13 = sbr.rel (0) target = $region9
    $region8: #{tpu_custom_call.1} parent=1 // pred_region
      _
    $region9: #{tpu_custom_call.1} parent=1 // pred_fallthru
      _
    // Predicated region
    $region10: #{tpu_custom_call.1} parent=1 // pred_check
      _
    $region11: #{tpu_custom_call.1} parent=1 // pred_check_branch
      %15 = sbr.rel (0) target = $region13
    $region12: #{tpu_custom_call.1} parent=1 // pred_region
      _
    $region13: #{tpu_custom_call.1} parent=1 // pred_fallthru
      _
    // Predicated region
    $region14: #{tpu_custom_call.1} parent=1 // pred_check
      _
    $region15: #{tpu_custom_call.1} parent=1 // pred_check_branch
      %17 = sbr.rel (0) target = $region17
    $region16: #{tpu_custom_call.1} parent=1 // pred_region
      _
    $region17: #{tpu_custom_call.1} parent=1 // pred_fallthru
      _
    %v18 = vld [vmem:[%s0] sm:$0xff]
    %v19 = vld [vmem:[%s0 + $0x8] sm:$0xff]
    %v20 = vlaneseq
    %v21 = vand.u32 %v20, 127
    %22 = vset.pattern.permute.xlu0 0
    %23 = vperm.xlu0 %22, %v18
    %v24 = vpop.permute.xlu0 %23
    %25 = vset.pattern.permute.xlu0 0
    %26 = vperm.xlu0 %25, %v19
    %v27 = vpop.permute.xlu0 %26
    %vm28 = vcmp.eq.s32.totalorder %v24, %v21
    %vm29 = vcmp.eq.s32.totalorder %v27, %v21
    %v30 = vsel %vm28, 1, 0
    %v31 = vsel %vm29, 1, 0
    %v32 = vcvt.s32.f32 %v30
    %v33 = vcvt.s32.f32 %v31
    %v34 = vld [vmem:[%s1] sm:$0xff]
    %v35 = vld [vmem:[%s1 + $0x8] sm:$0xff]
    %v36 = vld [vmem:[%s1 + $0x10] sm:$0xff]
    %v37 = vld [vmem:[%s1 + $0x18] sm:$0xff]
    %v38 = vld [vmem:[%s1 + $0x20] sm:$0xff]
    %v39 = vld [vmem:[%s1 + $0x28] sm:$0xff]
    %v40 = vld [vmem:[%s1 + $0x30] sm:$0xff]
    %v41 = vld [vmem:[%s1 + $0x38] sm:$0xff]
    %v42 = vld [vmem:[%s1 + $0x40] sm:$0xff]
    %v43 = vld [vmem:[%s1 + $0x48] sm:$0xff]
    %v44 = vld [vmem:[%s1 + $0x50] sm:$0xff]
    %v45 = vld [vmem:[%s1 + $0x58] sm:$0xff]
    %v46 = vld [vmem:[%s1 + $0x60] sm:$0xff]
    %vm47 = vcmask 850944
    %v49 = vsel %vm47, %v32, 0
    %v52 = vsel %vm47, %v33, 0
    %54 = vmatprep.subr.mxu0 0.0
    %55 = vmatpush1.msra.mxu0 %v34
    %56 = vmatprep.subr.mxu0 0.0
    %57 = vmatpush1.msra.mxu0 %v35
    %58 = vmatprep.subr.mxu0 0.0
    %59 = vmatpush1.msra.mxu0 %v36
    %60 = vmatprep.subr.mxu0 0.0
    %61 = vmatpush1.msra.mxu0 %v37
    %62 = vmatprep.subr.mxu0 0.0
    %63 = vmatpush1.msra.mxu0 %v38
    %64 = vmatprep.subr.mxu0 0.0
    %65 = vmatpush1.msra.mxu0 %v39
    %66 = vmatprep.subr.mxu0 0.0
    %67 = vmatpush1.msra.mxu0 %v40
    %68 = vmatprep.subr.mxu0 0.0
    %69 = vmatpush1.msra.mxu0 %v41
    %70 = vmatprep.subr.mxu0 0.0
    %71 = vmatpush1.msra.mxu0 %v42
    %72 = vmatprep.subr.mxu0 0.0
    %73 = vmatpush1.msra.mxu0 %v43
    %74 = vmatprep.subr.mxu0 0.0
    %75 = vmatpush1.msra.mxu0 %v44
    %76 = vmatprep.subr.mxu0 0.0
    %77 = vmatpush1.msra.mxu0 %v45
    %78 = vmatprep.subr.mxu0 0.0
    %79 = vmatpush1.msra.mxu0 %v46
    %80 = vmatprep.subr.mxu0 0.0
    %81 = vmatpush1.msra.mxu0 0.0
    %82 = vmatprep.subr.mxu0 0.0
    %83 = vmatpush1.msra.mxu0 0.0
    %84 = vmatprep.subr.mxu0 0.0
    %85 = vmatpush1.msra.mxu0 0.0
    %86 = vmatprep.subr.mxu0 0.0
    %87 = vmatpush1.msra.mxu0 0.0
    %88 = vmatprep.subr.mxu0 0.0
    %89 = vmatpush1.msra.mxu0 0.0
    %90 = vmatprep.subr.mxu0 0.0
    %91 = vmatpush1.msra.mxu0 0.0
    %92 = vmatprep.subr.mxu0 0.0
    %93 = vmatpush1.msra.mxu0 0.0
    %94 = vmatprep.subr.mxu0 0.0
    %95 = vmatpush1.msra.mxu0 0.0
    %96 = vmatprep.subr.mxu0 0.0
    %97 = vmatpush1.msra.mxu0 0.0
    %98 = vmatprep.subr.mxu0 0.0
    %99 = vmatpush1.msra.mxu0 0.0
    %100 = vmatprep.subr.mxu0 0.0
    %101 = vmatpush1.msra.mxu0 0.0
    %102 = vmatprep.subr.mxu0 0.0
    %103 = vmatpush1.msra.mxu0 0.0
    %104 = vmatprep.subr.mxu0 0.0
    %105 = vmatpush1.msra.mxu0 0.0
    %106 = vmatprep.subr.mxu0 0.0
    %107 = vmatpush1.msra.mxu0 0.0
    %108 = vmatprep.subr.mxu0 0.0
    %109 = vmatpush1.msra.mxu0 0.0
    %110 = vmatprep.subr.mxu0 0.0
    %111 = vmatpush1.msra.mxu0 0.0
    %112 = vmatprep.subr.mxu0 0.0
    %113 = vmatpush1.msra.mxu0 0.0
    %114 = vmatprep.subr.mxu0 0.0
    %115 = vmatpush1.msra.mxu0 0.0
    %116 = vmatprep.subr.mxu0 0.0
    %117 = vmatpush1.msra.mxu0 0.0
    %118 = vmatprep.mubr.f32.mxu0 0.0
    %119 = vmatmul.mubr.f32.gmra.mrb[0].mxu0 %v49
    %v120 = vpop.f32.mrb[0].mxu0
    %v121 = vadd.f32 0.0, %v120
    %v122 = vpop.f32.mrb[0].mxu0
    %123 = vmatprep.mubr.f32.mxu0 0.0
    %124 = vmatmul.mubr.f32.gmra.mrb[0].mxu0 %v52
    %v125 = vpop.f32.mrb[0].mxu0
    %v126 = vadd.f32 0.0, %v125
    %v127 = vpop.f32.mrb[0].mxu0
    %128 = vdwg.mxu0
    %v129 = vld [vmem:[%s2] sm:$0xff]
    %v130 = vld [vmem:[%s2 + $0x8] sm:$0xff]
    %v131 = vld [vmem:[%s2 + $0x10] sm:$0xff]
    %v132 = vld [vmem:[%s2 + $0x18] sm:$0xff]
    %v133 = vld [vmem:[%s3] sm:$0x1]
    %v135 = vlaneseq
    %v136 = vshrl.u32 %v135, 7
    %v137 = vsub.s32 0, %v136
    %v138 = vrot.slane %v133, %v137
    %vm140 = vcmask 261120
    %v142 = vsel %vm140, %v121, 0
    %v145 = vsel %vm140, %v126, 0
    %147 = vmatprep.subr.mxu0 0.0
    %148 = vmatpush1.msra.mxu0 %v129
    %149 = vmatprep.subr.mxu0 0.0
    %150 = vmatpush1.msra.mxu0 %v130
    %151 = vmatprep.subr.mxu0 0.0
    %152 = vmatpush1.msra.mxu0 %v131
    %153 = vmatprep.subr.mxu0 0.0
    %154 = vmatpush1.msra.mxu0 %v132
    %155 = vmatprep.subr.mxu0 0.0
    %156 = vmatpush1.msra.mxu0 0.0
    %157 = vmatprep.subr.mxu0 0.0
    %158 = vmatpush1.msra.mxu0 0.0
    %159 = vmatprep.subr.mxu0 0.0
    %160 = vmatpush1.msra.mxu0 0.0
    %161 = vmatprep.subr.mxu0 0.0
    %162 = vmatpush1.msra.mxu0 0.0
    %163 = vmatprep.subr.mxu0 0.0
    %164 = vmatpush1.msra.mxu0 0.0
    %165 = vmatprep.subr.mxu0 0.0
    %166 = vmatpush1.msra.mxu0 0.0
    %167 = vmatprep.subr.mxu0 0.0
    %168 = vmatpush1.msra.mxu0 0.0
    %169 = vmatprep.subr.mxu0 0.0
    %170 = vmatpush1.msra.mxu0 0.0
    %171 = vmatprep.subr.mxu0 0.0
    %172 = vmatpush1.msra.mxu0 0.0
    %173 = vmatprep.subr.mxu0 0.0
    %174 = vmatpush1.msra.mxu0 0.0
    %175 = vmatprep.subr.mxu0 0.0
    %176 = vmatpush1.msra.mxu0 0.0
    %177 = vmatprep.subr.mxu0 0.0
    %178 = vmatpush1.msra.mxu0 0.0
    %179 = vmatprep.subr.mxu0 0.0
    %180 = vmatpush1.msra.mxu0 0.0
    %181 = vmatprep.subr.mxu0 0.0
    %182 = vmatpush1.msra.mxu0 0.0
    %183 = vmatprep.subr.mxu0 0.0
    %184 = vmatpush1.msra.mxu0 0.0
    %185 = vmatprep.subr.mxu0 0.0
    %186 = vmatpush1.msra.mxu0 0.0
    %187 = vmatprep.subr.mxu0 0.0
    %188 = vmatpush1.msra.mxu0 0.0
    %189 = vmatprep.subr.mxu0 0.0
    %190 = vmatpush1.msra.mxu0 0.0
    %191 = vmatprep.subr.mxu0 0.0
    %192 = vmatpush1.msra.mxu0 0.0
    %193 = vmatprep.subr.mxu0 0.0
    %194 = vmatpush1.msra.mxu0 0.0
    %195 = vmatprep.subr.mxu0 0.0
    %196 = vmatpush1.msra.mxu0 0.0
    %197 = vmatprep.subr.mxu0 0.0
    %198 = vmatpush1.msra.mxu0 0.0
    %199 = vmatprep.subr.mxu0 0.0
    %200 = vmatpush1.msra.mxu0 0.0
    %201 = vmatprep.subr.mxu0 0.0
    %202 = vmatpush1.msra.mxu0 0.0
    %203 = vmatprep.subr.mxu0 0.0
    %204 = vmatpush1.msra.mxu0 0.0
    %205 = vmatprep.subr.mxu0 0.0
    %206 = vmatpush1.msra.mxu0 0.0
    %207 = vmatprep.subr.mxu0 0.0
    %208 = vmatpush1.msra.mxu0 0.0
    %209 = vmatprep.subr.mxu0 0.0
    %210 = vmatpush1.msra.mxu0 0.0
    %211 = vmatprep.mubr.f32.mxu0 0.0
    %212 = vmatmul.mubr.f32.gmra.mrb[0].mxu0 %v142
    %v213 = vpop.f32.mrb[0].mxu0
    %v214 = vadd.f32 %v138, %v213
    %v215 = vpop.f32.mrb[0].mxu0
    %216 = vmatprep.mubr.f32.mxu0 0.0
    %217 = vmatmul.mubr.f32.gmra.mrb[0].mxu0 %v145
    %v218 = vpop.f32.mrb[0].mxu0
    %v219 = vadd.f32 %v138, %v218
    %v220 = vpop.f32.mrb[0].mxu0
    %221 = vdwg.mxu0
    %vm222 = vcmask 130048
    %223 = vst.msk [vmem:[#allocation2] sm:$0xff] %vm222, %v214
    %224 = vst.msk [vmem:[#allocation2 + $0x8] sm:$0xff] %vm222, %v219
    // Predicated region
    $region18: #{tpu_custom_call.1} parent=1 // pred_check
      _
    $region19: #{tpu_custom_call.1} parent=1 // pred_check_branch
      %226 = sbr.rel (0) target = $region21
    $region20: #{tpu_custom_call.1} parent=1 // pred_region
      %s228 = ssub.s32 256, 256
      %229 = vsyncadd [#allocation3], %s228
      %s230 = sshll.u32 [#allocation2], 4
      %s231 = int_to_ptr.vmem [resolvable:$true] %s230
      %236 = dma.vmem_to_hbm [thread:$0]  %s231, 256, %s4, [#allocation3], 128, 128, 8
    $region21: #{tpu_custom_call.1} parent=1 // pred_fallthru
      _
    // Predicated region
    $region22: #{tpu_custom_call.1} parent=1 // pred_check
      _
    $region23: #{tpu_custom_call.1} parent=1 // pred_check_branch
      %238 = sbr.rel (0) target = $region25
    $region24: #{tpu_custom_call.1} parent=1 // pred_region
      %239 = dma.done [#allocation3], 256
    $region25: #{tpu_custom_call.1} parent=1 // pred_fallthru
      _
    %240 = vsyncpa [#allocation3], 1

</llo_original>
